<compile_context>
chip_gen: v7x
topology: tpu7x:2x2x1
jax: 0.10.0
libtpu: 0.0.40
codegen_flags: <defaults>
</compile_context>

<pallas_src>
import jax
import jax.numpy as jnp
import numpy as np
from jax.experimental import pallas as pl
from jax.experimental.pallas import tpu as pltpu


def _round_up(x, m):
    return (x + m - 1) // m * m


# ------------------------------------------------ training-mode forward -----
def _skipgram_train_kernel(rows_ref, w_out_t_ref, scores_ref):
    # (tb, E) @ (E, tv) -> (tb, tv): one wide MXU matmul per grid step,
    # bf16 operands, f32 accumulation, lane-dense f32 stores.
    scores_ref[...] = jnp.dot(
        rows_ref[...], w_out_t_ref[...],
        preferred_element_type=jnp.float32,
    ).astype(scores_ref.dtype)


def skipgram_train_forward(target, w_in, w_out, *, tb_max=256, tv_max=2048,
                           compute_dtype=jnp.bfloat16, w_out_t=None):
    """scores = in_embed.weight[target] @ out_embed.weight.T  -> [B, V]"""
    B = target.shape[0]
    V, E = w_in.shape
    assert w_out.shape == (V, E)

    # batch tile: multiple of 16 (bf16 sublane packing, MXU M-alignment at 256)
    tb_max = max(16, _round_up(tb_max, 16))
    tb = min(tb_max, _round_up(B, 16))
    Bp = _round_up(B, tb)

    # vocab tile: multiple of 128 (lane), 256-aligned when possible (MXU N)
    tv_max = max(128, _round_up(tv_max, 128))
    tv_align = 256 if tv_max >= 256 else 128
    tv = min(tv_max, _round_up(V, tv_align))
    Vp = _round_up(V, tv)

    tgt = target.astype(jnp.int32)
    if Bp != B:
        tgt = jnp.pad(tgt, (0, Bp - B))        # padded rows gather index 0

    # Fused XLA gather in the wrapper (coalesces far better than tb tiny
    # in-kernel DMAs and removes the gather from the MXU critical path).
    rows = jnp.take(w_in.astype(compute_dtype), tgt, axis=0)        # (Bp, E)

    # w_out^T computed once per call; caller may pass a cached transpose.
    if w_out_t is None:
        w_out_t = jnp.transpose(w_out).astype(compute_dtype)        # (E, V)
    else:
        w_out_t = w_out_t.astype(compute_dtype)
    if w_out_t.shape[1] < Vp:
        w_out_t = jnp.pad(w_out_t, ((0, 0), (0, Vp - w_out_t.shape[1])))

    grid = (Bp // tb, Vp // tv)
    ob = jnp.dtype(compute_dtype).itemsize     # operand bytes (2 for bf16)

    grid_spec = pltpu.PrefetchScalarGridSpec(
        num_scalar_prefetch=0,
        grid=grid,
        in_specs=[
            pl.BlockSpec((tb, E), lambda i, j: (i, 0)),   # gathered rows tile
            pl.BlockSpec((E, tv), lambda i, j: (0, j)),   # w_out^T vocab tile
        ],
        out_specs=pl.BlockSpec((tb, tv), lambda i, j: (i, j)),
    )

    # double-buffered rows + w_out^T tiles (bf16) + output tile (f32) + slack;
    # capped at 56 MiB so it also fits v7x's 64 MiB per-TC VMEM.
    vmem_needed = (2 * tb * E * ob + 2 * E * tv * ob + 2 * tb * tv * 4) \
        + (4 << 20)
    vmem_limit = int(min(max(vmem_needed, 16 << 20), 56 << 20))

    scores_p = pl.pallas_call(
        _skipgram_train_kernel,
        grid_spec=grid_spec,
        out_shape=jax.ShapeDtypeStruct((Bp, Vp), jnp.float32),
        compiler_params=pltpu.CompilerParams(
            dimension_semantics=("parallel", "parallel"),
            vmem_limit_bytes=vmem_limit,
        ),
        cost_estimate=pl.CostEstimate(
            flops=2 * Bp * Vp * E,
            transcendentals=0,
            # w_out^T is re-streamed once per batch tile.
            bytes_accessed=((Bp // tb) * Vp * E * ob
                            + Bp * E * ob
                            + Bp * Vp * 4),
        ),
    )(rows, w_out_t)

    return scores_p[:B, :V]


# ---------------------------------------------------- eval-mode forward -----
def _skipgram_eval_kernel(tgt_ref, w_in_hbm, out_ref, sem):
    i = pl.program_id(0)
    tb = out_ref.shape[0]
    base = i * tb

    # Issue tb per-row DMAs straight from the HBM table into the output block.
    @pl.loop(0, tb)
    def _issue(r):
        idx = tgt_ref[base + r]                       # scalar read from SMEM
        pltpu.make_async_copy(w_in_hbm.at[idx], out_ref.at[r], sem).start()

    # ONE aggregate wait: the DMA semaphore counts bytes, and the tb row
    # copies sum to exactly the bytes of the full (tb, E) output block.
    pltpu.make_async_copy(w_in_hbm.at[pl.ds(0, tb)], out_ref, sem).wait()


def skipgram_eval_forward(target, w_in, *, tb_max=256):
    """in_embeds = in_embed.weight[target] -> [B, E]"""
    B = target.shape[0]
    V, E = w_in.shape

    tb_max = max(8, _round_up(tb_max, 8))
    tb = min(tb_max, _round_up(B, 8))
    Bp = _round_up(B, tb)

    tgt = target.astype(jnp.int32)
    if Bp != B:
        tgt = jnp.pad(tgt, (0, Bp - B))

    grid_spec = pltpu.PrefetchScalarGridSpec(
        num_scalar_prefetch=1,                       # `target` -> SMEM
        grid=(Bp // tb,),
        in_specs=[pl.BlockSpec(memory_space=pl.ANY)],  # table stays in HBM
        out_specs=pl.BlockSpec((tb, E), lambda i, tgt: (i, 0)),
        scratch_shapes=[pltpu.SemaphoreType.DMA(())],
    )

    vmem_needed = 2 * tb * E * 4 + (4 << 20)
    vmem_limit = int(min(max(vmem_needed, 16 << 20), 56 << 20))

    out = pl.pallas_call(
        _skipgram_eval_kernel,
        grid_spec=grid_spec,
        out_shape=jax.ShapeDtypeStruct((Bp, E), jnp.float32),
        compiler_params=pltpu.CompilerParams(
            dimension_semantics=("parallel",),
            vmem_limit_bytes=vmem_limit,
        ),
    )(tgt, w_in.astype(jnp.float32))

    return out[:B]


if __name__ == "__main__":
    # Small but non-trivial shapes: exercises vocab tiling/padding (V=700 ->
    # tv=768) and batch-tile padding (B=20 -> tb=32).
    vocab_size, embed_size, batch = 700, 128, 20

    key = jax.random.PRNGKey(0)
    k_in, k_out, k_tgt = jax.random.split(key, 3)
    # deterministic synthetic parameters (nn.Embedding default init ~ N(0,1))
    w_in = jax.random.normal(k_in, (vocab_size, embed_size), jnp.float32)
    w_out = jax.random.normal(k_out, (vocab_size, embed_size), jnp.float32)
    target = jax.random.randint(k_tgt, (batch,), 0, vocab_size, dtype=jnp.int32)

    # training-mode forward (the matmul hot path, bf16 operands / f32 acc)
    scores = jax.block_until_ready(skipgram_train_forward(target, w_in, w_out))
    assert scores.shape == (batch, vocab_size)

    tgt_np = np.asarray(target)
    # reference with identical bf16 operand rounding, f32 accumulation
    w_in_bf = np.asarray(w_in.astype(jnp.bfloat16).astype(jnp.float32))
    w_out_bf = np.asarray(w_out.astype(jnp.bfloat16).astype(jnp.float32))
    ref_bf = w_in_bf[tgt_np] @ w_out_bf.T
    np.testing.assert_allclose(np.asarray(scores), ref_bf, rtol=5e-3, atol=5e-3)

    # sanity vs the exact-f32 module semantics (looser: bf16 quantization)
    ref_f32 = np.asarray(w_in)[tgt_np] @ np.asarray(w_out).T
    np.testing.assert_allclose(np.asarray(scores), ref_f32, rtol=5e-2, atol=0.5)

    # eval-mode forward (embedding lookup only, exact f32)
    embeds = jax.block_until_ready(skipgram_eval_forward(target, w_in))
    assert embeds.shape == (batch, embed_size)
    ref_embeds = np.asarray(w_in)[tgt_np]
    np.testing.assert_allclose(np.asarray(embeds), ref_embeds, rtol=1e-6, atol=1e-6)

    print("KERNEL_OK")
</pallas_src>

<mosaic_0001>
module attributes {stable_mosaic.version = 11 : i64} {
  func.func @_skipgram_train_kernel(%arg0: i32, %arg1: i32, %arg2: memref<32x128xbf16, #tpu.memory_space<vmem>>, %arg3: memref<128x768xbf16, #tpu.memory_space<vmem>>, %arg4: memref<32x768xf32, #tpu.memory_space<vmem>>) attributes {dimension_semantics = [#tpu.dimension_semantics<parallel>, #tpu.dimension_semantics<parallel>], iteration_bounds = array<i64: 1, 1>, scalar_prefetch = 0 : i64, scratch_operands = 0 : i64, tpu.core_type = #tpu.core_type<tc>, window_params = [{transform_indices = @transform_0, window_bounds = array<i64: 32, 128>}, {transform_indices = @transform_1, window_bounds = array<i64: 128, 768>}, {transform_indices = @transform_2, window_bounds = array<i64: 32, 768>}]} {
    %c0 = arith.constant 0 : index
    %c0_0 = arith.constant 0 : index
    %0 = vector.load %arg2[%c0, %c0_0] : memref<32x128xbf16, #tpu.memory_space<vmem>>, vector<32x128xbf16>
    %c0_1 = arith.constant 0 : index
    %c0_2 = arith.constant 0 : index
    %1 = vector.load %arg3[%c0_1, %c0_2] : memref<128x768xbf16, #tpu.memory_space<vmem>>, vector<128x768xbf16>
    %cst = arith.constant dense<0.000000e+00> : vector<32x768xf32>
    %2 = tpu.matmul %0, %1, %cst {dimension_numbers = #tpu.dot_dimension_numbers<[1], [0], [0], [1], [0, 0, 1, 1], [], []>} : vector<32x128xbf16>, vector<128x768xbf16>, vector<32x768xf32> -> vector<32x768xf32>
    %c0_3 = arith.constant 0 : index
    %c0_4 = arith.constant 0 : index
    %3 = vector.load %arg4[%c0_3, %c0_4] : memref<32x768xf32, #tpu.memory_space<vmem>>, vector<32x768xf32>
    tpu.vector_store %arg4[%c0_3, %c0_4], %2 {strides = array<i32>} : memref<32x768xf32, #tpu.memory_space<vmem>>, vector<32x768xf32>,
    return
  }
  func.func @transform_0(%arg0: i32, %arg1: i32) -> (i32, i32) {
    %c0_i32 = arith.constant 0 : i32
    %c0_i32_0 = arith.constant 0 : i32
    return %arg0, %c0_i32 : i32, i32
  }
  func.func @transform_1(%arg0: i32, %arg1: i32) -> (i32, i32) {
    %c0_i32 = arith.constant 0 : i32
    %c0_i32_0 = arith.constant 0 : i32
    return %c0_i32, %arg1 : i32, i32
  }
  func.func @transform_2(%arg0: i32, %arg1: i32) -> (i32, i32) {
    %c0_i32 = arith.constant 0 : i32
    return %arg0, %arg1 : i32, i32
  }
}

</mosaic_0001>

<llo_original>
// kernel: tpu_custom_call.1
$region0: #{tpu_custom_call.1}
  #allocation0 [shape = 'u32[]', space=smem, size = 0x4, offset = 0x4, fixed_abs, tag = 'smem constant byte address 0x4 - core index']
  #allocation1 [shape = 'u32[144,128]{1,0:T(1,128)}', space=vmem, size = 0x12000, scoped, tag = 'internal scratch']
  %s0 = inlined_call_operand.hbm [shape: bf16[32,128], index: 0, kind: input, shape index: {}]
  %s1 = inlined_call_operand.hbm [shape: bf16[128,768], index: 1, kind: input, shape index: {}]
  %s2 = inlined_call_operand.hbm [shape: f32[32,768], index: 2, kind: output, shape index: {}]
  %s3 = sld [smem:[#allocation0]]
  $region26: #{tpu_custom_call.1} parent=0
    _
  %s5 = ssub.s32 1, %s3
  %s6 = scalar_select 0, %s5, %s3
  $region1: #{tpu_custom_call.1} parent=0
    #allocation2 [shape = 'u8[8192]{0}', space=vmem, size = 0x2000, scoped, tag = 'input window, operand 0, single buffered']
    #allocation3 [shape = 's32[1]{0}', space=sflag, size = 0x4, scoped, tag = 'scoped memory for tpu_custom_call.1']
    #allocation4 [shape = 's32[1]{0}', space=sflag, size = 0x4, scoped, tag = 'scoped memory for tpu_custom_call.1']
    #allocation5 [shape = 'u8[196608]{0}', space=vmem, size = 0x30000, scoped, tag = 'input window, operand 1, single buffered']
    #allocation6 [shape = 's32[1]{0}', space=sflag, size = 0x4, scoped, tag = 'scoped memory for tpu_custom_call.1']
    #allocation7 [shape = 'u8[98304]{0}', space=vmem, size = 0x18000, scoped, tag = 'output window, operand 0, single buffered']
    %7 = vsyncpa [#allocation3], 0
    %8 = vsyncpa [#allocation6], 0
    %9 = vsyncpa [#allocation4], 0
    // Predicated region
    $region2: #{tpu_custom_call.1} parent=1 // pred_check
      _
    $region3: #{tpu_custom_call.1} parent=1 // pred_check_branch
      %11 = sbr.rel (0) target = $region5
    $region4: #{tpu_custom_call.1} parent=1 // pred_region
      %s13 = ssub.s32 256, 256
      %14 = vsyncadd [#allocation3], %s13
      %s15 = sshll.u32 [#allocation2], 4
      %s16 = int_to_ptr.vmem [resolvable:$true] %s15
      %21 = dma.hbm_to_vmem [thread:$0]  %s0, 256, %s16, [#allocation3], 64, 64, 4
    $region5: #{tpu_custom_call.1} parent=1 // pred_fallthru
      _
    // Predicated region
    $region6: #{tpu_custom_call.1} parent=1 // pred_check
      _
    $region7: #{tpu_custom_call.1} parent=1 // pred_check_branch
      %23 = sbr.rel (0) target = $region9
    $region8: #{tpu_custom_call.1} parent=1 // pred_region
      %s25 = ssub.s32 6144, 6144
      %26 = vsyncadd [#allocation6], %s25
      %s27 = sshll.u32 [#allocation5], 4
      %s28 = int_to_ptr.vmem [resolvable:$true] %s27
      %33 = dma.hbm_to_vmem [thread:$0]  %s1, 6144, %s28, [#allocation6], 384, 384, 24
    $region9: #{tpu_custom_call.1} parent=1 // pred_fallthru
      _
    // Predicated region
    $region10: #{tpu_custom_call.1} parent=1 // pred_check
      _
    $region11: #{tpu_custom_call.1} parent=1 // pred_check_branch
      %35 = sbr.rel (0) target = $region13
    $region12: #{tpu_custom_call.1} parent=1 // pred_region
      %36 = dma.done [#allocation3], 256
    $region13: #{tpu_custom_call.1} parent=1 // pred_fallthru
      _
    // Predicated region
    $region14: #{tpu_custom_call.1} parent=1 // pred_check
      _
    $region15: #{tpu_custom_call.1} parent=1 // pred_check_branch
      %38 = sbr.rel (0) target = $region17
    $region16: #{tpu_custom_call.1} parent=1 // pred_region
      %39 = dma.done [#allocation6], 6144
    $region17: #{tpu_custom_call.1} parent=1 // pred_fallthru
      _
    %v41 = vld [vmem:[#allocation2] sm:$0xf]
    %v42 = vld [vmem:[#allocation2 + $0x4] sm:$0xf]
    %v43 = vld [vmem:[#allocation2 + $0x8] sm:$0xf]
    %v44 = vld [vmem:[#allocation2 + $0xc] sm:$0xf]
    %v45 = vld [vmem:[#allocation5] sm:$0xff]
    %v46 = vld [vmem:[#allocation5 + $0x8] sm:$0xff]
    %v47 = vld [vmem:[#allocation5 + $0x10] sm:$0xff]
    %v48 = vld [vmem:[#allocation5 + $0x18] sm:$0xff]
    %v49 = vld [vmem:[#allocation5 + $0x20] sm:$0xff]
    %v50 = vld [vmem:[#allocation5 + $0x28] sm:$0xff]
    %v51 = vld [vmem:[#allocation5 + $0x30] sm:$0xff]
    %v52 = vld [vmem:[#allocation5 + $0x38] sm:$0xff]
    %v53 = vld [vmem:[#allocation5 + $0x40] sm:$0xff]
    %v54 = vld [vmem:[#allocation5 + $0x48] sm:$0xff]
    %v55 = vld [vmem:[#allocation5 + $0x50] sm:$0xff]
    %v56 = vld [vmem:[#allocation5 + $0x58] sm:$0xff]
    %v57 = vld [vmem:[#allocation5 + $0x60] sm:$0xff]
    %v58 = vld [vmem:[#allocation5 + $0x68] sm:$0xff]
    %v59 = vld [vmem:[#allocation5 + $0x70] sm:$0xff]
    %v60 = vld [vmem:[#allocation5 + $0x78] sm:$0xff]
    %v61 = vld [vmem:[#allocation5 + $0x80] sm:$0xff]
    %v62 = vld [vmem:[#allocation5 + $0x88] sm:$0xff]
    %v63 = vld [vmem:[#allocation5 + $0x90] sm:$0xff]
    %v64 = vld [vmem:[#allocation5 + $0x98] sm:$0xff]
    %v65 = vld [vmem:[#allocation5 + $0xa0] sm:$0xff]
    %v66 = vld [vmem:[#allocation5 + $0xa8] sm:$0xff]
    %v67 = vld [vmem:[#allocation5 + $0xb0] sm:$0xff]
    %v68 = vld [vmem:[#allocation5 + $0xb8] sm:$0xff]
    %v69 = vld [vmem:[#allocation5 + $0xc0] sm:$0xff]
    %v70 = vld [vmem:[#allocation5 + $0xc8] sm:$0xff]
    %v71 = vld [vmem:[#allocation5 + $0xd0] sm:$0xff]
    %v72 = vld [vmem:[#allocation5 + $0xd8] sm:$0xff]
    %v73 = vld [vmem:[#allocation5 + $0xe0] sm:$0xff]
    %v74 = vld [vmem:[#allocation5 + $0xe8] sm:$0xff]
    %v75 = vld [vmem:[#allocation5 + $0xf0] sm:$0xff]
    %v76 = vld [vmem:[#allocation5 + $0xf8] sm:$0xff]
    %v77 = vld [vmem:[#allocation5 + $0x100] sm:$0xff]
    %v78 = vld [vmem:[#allocation5 + $0x108] sm:$0xff]
    %v79 = vld [vmem:[#allocation5 + $0x110] sm:$0xff]
    %v80 = vld [vmem:[#allocation5 + $0x118] sm:$0xff]
    %v81 = vld [vmem:[#allocation5 + $0x120] sm:$0xff]
    %v82 = vld [vmem:[#allocation5 + $0x128] sm:$0xff]
    %v83 = vld [vmem:[#allocation5 + $0x130] sm:$0xff]
    %v84 = vld [vmem:[#allocation5 + $0x138] sm:$0xff]
    %v85 = vld [vmem:[#allocation5 + $0x140] sm:$0xff]
    %v86 = vld [vmem:[#allocation5 + $0x148] sm:$0xff]
    %v87 = vld [vmem:[#allocation5 + $0x150] sm:$0xff]
    %v88 = vld [vmem:[#allocation5 + $0x158] sm:$0xff]
    %v89 = vld [vmem:[#allocation5 + $0x160] sm:$0xff]
    %v90 = vld [vmem:[#allocation5 + $0x168] sm:$0xff]
    %v91 = vld [vmem:[#allocation5 + $0x170] sm:$0xff]
    %v92 = vld [vmem:[#allocation5 + $0x178] sm:$0xff]
    %v97 = vunpack.c.l.b16 %v41
    %v98 = vunpack.c.l.b16 %v42
    %v99 = vunpack.c.l.b16 %v43
    %v100 = vunpack.c.l.b16 %v44
    %v101 = vpack.c.b16 %v98, %v97
    %v102 = vpack.c.b16 %v100, %v99
    %v153 = vunpack.c.l.b16 %v45
    %v154 = vunpack.c.h.b16 %v45
    %v155 = vunpack.c.l.b16 %v46
    %v156 = vunpack.c.h.b16 %v46
    %v157 = vunpack.c.l.b16 %v47
    %v158 = vunpack.c.h.b16 %v47
    %v159 = vunpack.c.l.b16 %v48
    %v160 = vunpack.c.h.b16 %v48
    %v161 = vunpack.c.l.b16 %v49
    %v162 = vunpack.c.h.b16 %v49
    %v163 = vunpack.c.l.b16 %v50
    %v164 = vunpack.c.h.b16 %v50
    %v165 = vunpack.c.l.b16 %v51
    %v166 = vunpack.c.h.b16 %v51
    %v167 = vunpack.c.l.b16 %v52
    %v168 = vunpack.c.h.b16 %v52
    %v169 = vunpack.c.l.b16 %v53
    %v170 = vunpack.c.h.b16 %v53
    %v171 = vunpack.c.l.b16 %v54
    %v172 = vunpack.c.h.b16 %v54
    %v173 = vunpack.c.l.b16 %v55
    %v174 = vunpack.c.h.b16 %v55
    %v175 = vunpack.c.l.b16 %v56
    %v176 = vunpack.c.h.b16 %v56
    %v177 = vunpack.c.l.b16 %v57
    %v178 = vunpack.c.h.b16 %v57
    %v179 = vunpack.c.l.b16 %v58
    %v180 = vunpack.c.h.b16 %v58
    %v181 = vunpack.c.l.b16 %v59
    %v182 = vunpack.c.h.b16 %v59
    %v183 = vunpack.c.l.b16 %v60
    %v184 = vunpack.c.h.b16 %v60
    %v185 = vunpack.c.l.b16 %v61
    %v186 = vunpack.c.h.b16 %v61
    %v187 = vunpack.c.l.b16 %v62
    %v188 = vunpack.c.h.b16 %v62
    %v189 = vunpack.c.l.b16 %v63
    %v190 = vunpack.c.h.b16 %v63
    %v191 = vunpack.c.l.b16 %v64
    %v192 = vunpack.c.h.b16 %v64
    %v193 = vunpack.c.l.b16 %v65
    %v194 = vunpack.c.h.b16 %v65
    %v195 = vunpack.c.l.b16 %v66
    %v196 = vunpack.c.h.b16 %v66
    %v197 = vunpack.c.l.b16 %v67
    %v198 = vunpack.c.h.b16 %v67
    %v199 = vunpack.c.l.b16 %v68
    %v200 = vunpack.c.h.b16 %v68
    %v201 = vunpack.c.l.b16 %v69
    %v202 = vunpack.c.h.b16 %v69
    %v203 = vunpack.c.l.b16 %v70
    %v204 = vunpack.c.h.b16 %v70
    %v205 = vunpack.c.l.b16 %v71
    %v206 = vunpack.c.h.b16 %v71
    %v207 = vunpack.c.l.b16 %v72
    %v208 = vunpack.c.h.b16 %v72
    %v209 = vunpack.c.l.b16 %v73
    %v210 = vunpack.c.h.b16 %v73
    %v211 = vunpack.c.l.b16 %v74
    %v212 = vunpack.c.h.b16 %v74
    %v213 = vunpack.c.l.b16 %v75
    %v214 = vunpack.c.h.b16 %v75
    %v215 = vunpack.c.l.b16 %v76
    %v216 = vunpack.c.h.b16 %v76
    %v217 = vunpack.c.l.b16 %v77
    %v218 = vunpack.c.h.b16 %v77
    %v219 = vunpack.c.l.b16 %v78
    %v220 = vunpack.c.h.b16 %v78
    %v221 = vunpack.c.l.b16 %v79
    %v222 = vunpack.c.h.b16 %v79
    %v223 = vunpack.c.l.b16 %v80
    %v224 = vunpack.c.h.b16 %v80
    %v225 = vunpack.c.l.b16 %v81
    %v226 = vunpack.c.h.b16 %v81
    %v227 = vunpack.c.l.b16 %v82
    %v228 = vunpack.c.h.b16 %v82
    %v229 = vunpack.c.l.b16 %v83
    %v230 = vunpack.c.h.b16 %v83
    %v231 = vunpack.c.l.b16 %v84
    %v232 = vunpack.c.h.b16 %v84
    %v233 = vunpack.c.l.b16 %v85
    %v234 = vunpack.c.h.b16 %v85
    %v235 = vunpack.c.l.b16 %v86
    %v236 = vunpack.c.h.b16 %v86
    %v237 = vunpack.c.l.b16 %v87
    %v238 = vunpack.c.h.b16 %v87
    %v239 = vunpack.c.l.b16 %v88
    %v240 = vunpack.c.h.b16 %v88
    %v241 = vunpack.c.l.b16 %v89
    %v242 = vunpack.c.h.b16 %v89
    %v243 = vunpack.c.l.b16 %v90
    %v244 = vunpack.c.h.b16 %v90
    %v245 = vunpack.c.l.b16 %v91
    %v246 = vunpack.c.h.b16 %v91
    %v247 = vunpack.c.l.b16 %v92
    %v248 = vunpack.c.h.b16 %v92
    %v249 = vpack.c.b16 %v159, %v153
    %v250 = vpack.c.b16 %v160, %v154
    %v251 = vpack.c.b16 %v161, %v155
    %v252 = vpack.c.b16 %v162, %v156
    %v253 = vpack.c.b16 %v163, %v157
    %v254 = vpack.c.b16 %v164, %v158
    %v255 = vpack.c.b16 %v171, %v165
    %v256 = vpack.c.b16 %v172, %v166
    %v257 = vpack.c.b16 %v173, %v167
    %v258 = vpack.c.b16 %v174, %v168
    %v259 = vpack.c.b16 %v175, %v169
    %v260 = vpack.c.b16 %v176, %v170
    %v261 = vpack.c.b16 %v183, %v177
    %v262 = vpack.c.b16 %v184, %v178
    %v263 = vpack.c.b16 %v185, %v179
    %v264 = vpack.c.b16 %v186, %v180
    %v265 = vpack.c.b16 %v187, %v181
    %v266 = vpack.c.b16 %v188, %v182
    %v267 = vpack.c.b16 %v195, %v189
    %v268 = vpack.c.b16 %v196, %v190
    %v269 = vpack.c.b16 %v197, %v191
    %v270 = vpack.c.b16 %v198, %v192
    %v271 = vpack.c.b16 %v199, %v193
    %v272 = vpack.c.b16 %v200, %v194
    %v273 = vpack.c.b16 %v207, %v201
    %v274 = vpack.c.b16 %v208, %v202
    %v275 = vpack.c.b16 %v209, %v203
    %v276 = vpack.c.b16 %v210, %v204
    %v277 = vpack.c.b16 %v211, %v205
    %v278 = vpack.c.b16 %v212, %v206
    %v279 = vpack.c.b16 %v219, %v213
    %v280 = vpack.c.b16 %v220, %v214
    %v281 = vpack.c.b16 %v221, %v215
    %v282 = vpack.c.b16 %v222, %v216
    %v283 = vpack.c.b16 %v223, %v217
    %v284 = vpack.c.b16 %v224, %v218
    %v285 = vpack.c.b16 %v231, %v225
    %v286 = vpack.c.b16 %v232, %v226
    %v287 = vpack.c.b16 %v233, %v227
    %v288 = vpack.c.b16 %v234, %v228
    %v289 = vpack.c.b16 %v235, %v229
    %v290 = vpack.c.b16 %v236, %v230
    %v291 = vpack.c.b16 %v243, %v237
    %v292 = vpack.c.b16 %v244, %v238
    %v293 = vpack.c.b16 %v245, %v239
    %v294 = vpack.c.b16 %v246, %v240
    %v295 = vpack.c.b16 %v247, %v241
    %v296 = vpack.c.b16 %v248, %v242
    %345 = vmatprep.subr.bf16.mxu0 %v250
    %346 = vmatpush1.bf16.msra.mxu0 %v249
    %347 = vmatprep.subr.bf16.mxu0 %v256
    %348 = vmatpush1.bf16.msra.mxu0 %v255
    %349 = vmatprep.subr.bf16.mxu0 %v262
    %350 = vmatpush1.bf16.msra.mxu0 %v261
    %351 = vmatprep.subr.bf16.mxu0 %v268
    %352 = vmatpush1.bf16.msra.mxu0 %v267
    %353 = vmatprep.subr.bf16.mxu0 %v274
    %354 = vmatpush1.bf16.msra.mxu0 %v273
    %355 = vmatprep.subr.bf16.mxu0 %v280
    %356 = vmatpush1.bf16.msra.mxu0 %v279
    %357 = vmatprep.subr.bf16.mxu0 %v286
    %358 = vmatpush1.bf16.msra.mxu0 %v285
    %359 = vmatprep.subr.bf16.mxu0 %v292
    %360 = vmatpush1.bf16.msra.mxu0 %v291
    %361 = vmatprep.subr.bf16.mxu0 0
    %362 = vmatpush1.bf16.msra.mxu0 0
    %363 = vmatprep.subr.bf16.mxu0 0
    %364 = vmatpush1.bf16.msra.mxu0 0
    %365 = vmatprep.subr.bf16.mxu0 0
    %366 = vmatpush1.bf16.msra.mxu0 0
    %367 = vmatprep.subr.bf16.mxu0 0
    %368 = vmatpush1.bf16.msra.mxu0 0
    %369 = vmatprep.subr.bf16.mxu0 0
    %370 = vmatpush1.bf16.msra.mxu0 0
    %371 = vmatprep.subr.bf16.mxu0 0
    %372 = vmatpush1.bf16.msra.mxu0 0
    %373 = vmatprep.subr.bf16.mxu0 0
    %374 = vmatpush1.bf16.msra.mxu0 0
    %375 = vmatprep.subr.bf16.mxu0 0
    %376 = vmatpush1.bf16.msra.mxu0 0
    %377 = vmatprep.mubr.bf16.mxu0 0
    %378 = vmatmul.mubr.bf16.gmra.mrb[0].mxu0 %v101
    %v379 = vpop.f32.mrb[0].mxu0
    %v380 = vadd.f32 0.0, %v379
    %v381 = vpop.f32.mrb[0].mxu0
    %v382 = vadd.f32 0.0, %v381
    %v383 = vpop.f32.mrb[0].mxu0
    %v384 = vadd.f32 0.0, %v383
    %v385 = vpop.f32.mrb[0].mxu0
    %v386 = vadd.f32 0.0, %v385
    %387 = vmatprep.mubr.bf16.mxu0 0
    %388 = vmatmul.mubr.bf16.gmra.mrb[0].mxu0 %v102
    %v389 = vpop.f32.mrb[0].mxu0
    %v390 = vadd.f32 0.0, %v389
    %v391 = vpop.f32.mrb[0].mxu0
    %v392 = vadd.f32 0.0, %v391
    %v393 = vpop.f32.mrb[0].mxu0
    %v394 = vadd.f32 0.0, %v393
    %v395 = vpop.f32.mrb[0].mxu0
    %v396 = vadd.f32 0.0, %v395
    %397 = vdwg.mxu0
    %398 = vmatprep.subr.bf16.mxu0 %v252
    %399 = vmatpush1.bf16.msra.mxu0 %v251
    %400 = vmatprep.subr.bf16.mxu0 %v258
    %401 = vmatpush1.bf16.msra.mxu0 %v257
    %402 = vmatprep.subr.bf16.mxu0 %v264
    %403 = vmatpush1.bf16.msra.mxu0 %v263
    %404 = vmatprep.subr.bf16.mxu0 %v270
    %405 = vmatpush1.bf16.msra.mxu0 %v269
    %406 = vmatprep.subr.bf16.mxu0 %v276
    %407 = vmatpush1.bf16.msra.mxu0 %v275
    %408 = vmatprep.subr.bf16.mxu0 %v282
    %409 = vmatpush1.bf16.msra.mxu0 %v281
    %410 = vmatprep.subr.bf16.mxu0 %v288
    %411 = vmatpush1.bf16.msra.mxu0 %v287
    %412 = vmatprep.subr.bf16.mxu0 %v294
    %413 = vmatpush1.bf16.msra.mxu0 %v293
    %414 = vmatprep.subr.bf16.mxu0 0
    %415 = vmatpush1.bf16.msra.mxu0 0
    %416 = vmatprep.subr.bf16.mxu0 0
    %417 = vmatpush1.bf16.msra.mxu0 0
    %418 = vmatprep.subr.bf16.mxu0 0
    %419 = vmatpush1.bf16.msra.mxu0 0
    %420 = vmatprep.subr.bf16.mxu0 0
    %421 = vmatpush1.bf16.msra.mxu0 0
    %422 = vmatprep.subr.bf16.mxu0 0
    %423 = vmatpush1.bf16.msra.mxu0 0
    %424 = vmatprep.subr.bf16.mxu0 0
    %425 = vmatpush1.bf16.msra.mxu0 0
    %426 = vmatprep.subr.bf16.mxu0 0
    %427 = vmatpush1.bf16.msra.mxu0 0
    %428 = vmatprep.subr.bf16.mxu0 0
    %429 = vmatpush1.bf16.msra.mxu0 0
    %430 = vmatprep.mubr.bf16.mxu0 0
    %431 = vmatmul.mubr.bf16.gmra.mrb[0].mxu0 %v101
    %v432 = vpop.f32.mrb[0].mxu0
    %v433 = vadd.f32 0.0, %v432
    %v434 = vpop.f32.mrb[0].mxu0
    %v435 = vadd.f32 0.0, %v434
    %v436 = vpop.f32.mrb[0].mxu0
    %v437 = vadd.f32 0.0, %v436
    %v438 = vpop.f32.mrb[0].mxu0
    %v439 = vadd.f32 0.0, %v438
    %440 = vmatprep.mubr.bf16.mxu0 0
    %441 = vmatmul.mubr.bf16.gmra.mrb[0].mxu0 %v102
    %v442 = vpop.f32.mrb[0].mxu0
    %v443 = vadd.f32 0.0, %v442
    %v444 = vpop.f32.mrb[0].mxu0
    %v445 = vadd.f32 0.0, %v444
    %v446 = vpop.f32.mrb[0].mxu0
    %v447 = vadd.f32 0.0, %v446
    %v448 = vpop.f32.mrb[0].mxu0
    %v449 = vadd.f32 0.0, %v448
    %450 = vdwg.mxu0
    %451 = vmatprep.subr.bf16.mxu0 %v254
    %452 = vmatpush1.bf16.msra.mxu0 %v253
    %453 = vmatprep.subr.bf16.mxu0 %v260
    %454 = vmatpush1.bf16.msra.mxu0 %v259
    %455 = vmatprep.subr.bf16.mxu0 %v266
    %456 = vmatpush1.bf16.msra.mxu0 %v265
    %457 = vmatprep.subr.bf16.mxu0 %v272
    %458 = vmatpush1.bf16.msra.mxu0 %v271
    %459 = vmatprep.subr.bf16.mxu0 %v278
    %460 = vmatpush1.bf16.msra.mxu0 %v277
    %461 = vmatprep.subr.bf16.mxu0 %v284
    %462 = vmatpush1.bf16.msra.mxu0 %v283
    %463 = vmatprep.subr.bf16.mxu0 %v290
    %464 = vmatpush1.bf16.msra.mxu0 %v289
    %465 = vmatprep.subr.bf16.mxu0 %v296
    %466 = vmatpush1.bf16.msra.mxu0 %v295
    %467 = vmatprep.subr.bf16.mxu0 0
    %468 = vmatpush1.bf16.msra.mxu0 0
    %469 = vmatprep.subr.bf16.mxu0 0
    %470 = vmatpush1.bf16.msra.mxu0 0
    %471 = vmatprep.subr.bf16.mxu0 0
    %472 = vmatpush1.bf16.msra.mxu0 0
    %473 = vmatprep.subr.bf16.mxu0 0
    %474 = vmatpush1.bf16.msra.mxu0 0
    %475 = vmatprep.subr.bf16.mxu0 0
    %476 = vmatpush1.bf16.msra.mxu0 0
    %477 = vmatprep.subr.bf16.mxu0 0
    %478 = vmatpush1.bf16.msra.mxu0 0
    %479 = vmatprep.subr.bf16.mxu0 0
    %480 = vmatpush1.bf16.msra.mxu0 0
    %481 = vmatprep.subr.bf16.mxu0 0
    %482 = vmatpush1.bf16.msra.mxu0 0
    %483 = vmatprep.mubr.bf16.mxu0 0
    %484 = vmatmul.mubr.bf16.gmra.mrb[0].mxu0 %v101
    %v485 = vpop.f32.mrb[0].mxu0
    %v486 = vadd.f32 0.0, %v485
    %v487 = vpop.f32.mrb[0].mxu0
    %v488 = vadd.f32 0.0, %v487
    %v489 = vpop.f32.mrb[0].mxu0
    %v490 = vadd.f32 0.0, %v489
    %v491 = vpop.f32.mrb[0].mxu0
    %v492 = vadd.f32 0.0, %v491
    %493 = vmatprep.mubr.bf16.mxu0 0
    %494 = vmatmul.mubr.bf16.gmra.mrb[0].mxu0 %v102
    %v495 = vpop.f32.mrb[0].mxu0
    %v496 = vadd.f32 0.0, %v495
    %v497 = vpop.f32.mrb[0].mxu0
    %v498 = vadd.f32 0.0, %v497
    %v499 = vpop.f32.mrb[0].mxu0
    %v500 = vadd.f32 0.0, %v499
    %v501 = vpop.f32.mrb[0].mxu0
    %v502 = vadd.f32 0.0, %v501
    %503 = vdwg.mxu0
    %504 = vst [vmem:[#allocation7] sm:$0xff] %v380
    %505 = vst [vmem:[#allocation7 + $0x8] sm:$0xff] %v382
    %506 = vst [vmem:[#allocation7 + $0x10] sm:$0xff] %v433
    %507 = vst [vmem:[#allocation7 + $0x18] sm:$0xff] %v435
    %508 = vst [vmem:[#allocation7 + $0x20] sm:$0xff] %v486
    %509 = vst [vmem:[#allocation7 + $0x28] sm:$0xff] %v488
    %510 = vst [vmem:[#allocation7 + $0x30] sm:$0xff] %v384
    %511 = vst [vmem:[#allocation7 + $0x38] sm:$0xff] %v386
    %512 = vst [vmem:[#allocation7 + $0x40] sm:$0xff] %v437
    %513 = vst [vmem:[#allocation7 + $0x48] sm:$0xff] %v439
    %514 = vst [vmem:[#allocation7 + $0x50] sm:$0xff] %v490
    %515 = vst [vmem:[#allocation7 + $0x58] sm:$0xff] %v492
    %516 = vst [vmem:[#allocation7 + $0x60] sm:$0xff] %v390
    %517 = vst [vmem:[#allocation7 + $0x68] sm:$0xff] %v392
    %518 = vst [vmem:[#allocation7 + $0x70] sm:$0xff] %v443
    %519 = vst [vmem:[#allocation7 + $0x78] sm:$0xff] %v445
    %520 = vst [vmem:[#allocation7 + $0x80] sm:$0xff] %v496
    %521 = vst [vmem:[#allocation7 + $0x88] sm:$0xff] %v498
    %522 = vst [vmem:[#allocation7 + $0x90] sm:$0xff] %v394
    %523 = vst [vmem:[#allocation7 + $0x98] sm:$0xff] %v396
    %524 = vst [vmem:[#allocation7 + $0xa0] sm:$0xff] %v447
    %525 = vst [vmem:[#allocation7 + $0xa8] sm:$0xff] %v449
    %526 = vst [vmem:[#allocation7 + $0xb0] sm:$0xff] %v500
    %527 = vst [vmem:[#allocation7 + $0xb8] sm:$0xff] %v502
    // Predicated region
    $region18: #{tpu_custom_call.1} parent=1 // pred_check
      _
    $region19: #{tpu_custom_call.1} parent=1 // pred_check_branch
      %529 = sbr.rel (0) target = $region21
    $region20: #{tpu_custom_call.1} parent=1 // pred_region
      %s531 = ssub.s32 3072, 3072
      %532 = vsyncadd [#allocation4], %s531
      %s533 = sshll.u32 [#allocation7], 4
      %s534 = int_to_ptr.vmem [resolvable:$true] %s533
      %539 = dma.vmem_to_hbm [thread:$0]  %s534, 3072, %s2, [#allocation4], 768, 768, 48
    $region21: #{tpu_custom_call.1} parent=1 // pred_fallthru
      _
    // Predicated region
    $region22: #{tpu_custom_call.1} parent=1 // pred_check
      _
    $region23: #{tpu_custom_call.1} parent=1 // pred_check_branch
      %541 = sbr.rel (0) target = $region25
    $region24: #{tpu_custom_call.1} parent=1 // pred_region
      %542 = dma.done [#allocation4], 3072
    $region25: #{tpu_custom_call.1} parent=1 // pred_fallthru
      _
    %543 = vsyncpa [#allocation3], 1
    %544 = vsyncpa [#allocation6], 1
    %545 = vsyncpa [#allocation4], 1

</llo_original>
